<compile_context>
chip_gen: v7x
topology: tpu7x:2x2x1
jax: 0.10.0
libtpu: 0.0.40
codegen_flags: <defaults>
</compile_context>

<pallas_src>
import functools

import jax
import jax.numpy as jnp
from jax.experimental import pallas as pl
from jax.experimental.pallas import tpu as pltpu

EPS = 1e-5
LANE = 128
SUBLANE = 8


def _round_up(v, m):
    return (v + m - 1) // m * m


# --------------------------------------------------------------------------- #
# Fused single-pass kernel: full batch resident per feature tile.
# --------------------------------------------------------------------------- #
def _cbn_fused_kernel(x_ref, oh_ref, gtab_ref, btab_ref, o_ref, *,
                      c_total, tile_c, n_tiles):
    j = pl.program_id(0)
    x = x_ref[...].astype(jnp.float32)                      # (N, tile_c)
    n = x.shape[0]

    # Mask the overhanging (undefined) columns of the last feature tile out of the
    # statistics; the overhanging output lanes are masked by Pallas on store.
    if c_total % tile_c != 0:
        col = jax.lax.broadcasted_iota(jnp.int32, (1, tile_c), 1)
        x = jnp.where(col < (c_total - j * tile_c), x, 0.0)

    # Exact per-feature batch stats (centered second sweep: no cancellation).
    inv_n = jnp.float32(1.0 / n)
    mean = jnp.sum(x, axis=0, keepdims=True) * inv_n        # (1, tile_c)
    centered = x - mean
    var = jnp.sum(centered * centered, axis=0, keepdims=True) * inv_n
    inv_std = jax.lax.rsqrt(var + EPS)                      # EUP slot

    # VMEM-resident affine tables; slice this tile's window in-kernel.
    if n_tiles == 1:
        gt = gtab_ref[...].astype(jnp.float32)              # (K, tile_c)
        bt = btab_ref[...].astype(jnp.float32)
    else:
        col0 = pl.multiple_of(j * tile_c, LANE)
        gt = gtab_ref[:, pl.ds(col0, tile_c)].astype(jnp.float32)
        bt = btab_ref[:, pl.ds(col0, tile_c)].astype(jnp.float32)

    # Fold the batch stats into per-condition scale/shift, gather both with one
    # one-hot @ [a|b] matmul on the MXU, finish with a single FMA.
    a_tab = gt * inv_std                                    # (K, tile_c)
    b_tab = bt - gt * (mean * inv_std)
    ab = jnp.concatenate([a_tab, b_tab], axis=1)            # (K, 2*tile_c)
    AB = jnp.dot(oh_ref[...], ab, preferred_element_type=jnp.float32)  # (N, 2*tile_c)
    o_ref[...] = (x * AB[:, :tile_c] + AB[:, tile_c:]).astype(o_ref.dtype)


# --------------------------------------------------------------------------- #
# Two-pass fallback kernels (batch axis tiled) for batches too large for VMEM.
# --------------------------------------------------------------------------- #
def _stats_kernel(x_ref, s1_ref, s2_ref, *, n_total, c_total):
    ci = pl.program_id(0)
    ni = pl.program_id(1)
    tile_n, tile_c = x_ref.shape

    @pl.when(ni == 0)
    def _():
        s1_ref[...] = jnp.zeros_like(s1_ref)
        s2_ref[...] = jnp.zeros_like(s2_ref)

    x = x_ref[...].astype(jnp.float32)
    if c_total % tile_c != 0:
        col = jax.lax.broadcasted_iota(jnp.int32, (1, tile_c), 1)
        x = jnp.where(col < (c_total - ci * tile_c), x, 0.0)
    if n_total % tile_n != 0:
        row = jax.lax.broadcasted_iota(jnp.int32, (tile_n, 1), 0)
        x = jnp.where(row < (n_total - ni * tile_n), x, 0.0)

    s1_ref[...] += jnp.sum(x, axis=0, keepdims=True)
    s2_ref[...] += jnp.sum(x * x, axis=0, keepdims=True)


def _apply_kernel(x_ref, oh_ref, atab_ref, btab_ref, o_ref):
    x = x_ref[...].astype(jnp.float32)                                 # (tile_n, tile_c)
    tc = x.shape[1]
    ab = jnp.concatenate([atab_ref[...], btab_ref[...]], axis=1)       # (K, 2*tile_c)
    AB = jnp.dot(oh_ref[...], ab, preferred_element_type=jnp.float32)  # (tile_n, 2*tile_c)
    o_ref[...] = (x * AB[:, :tc] + AB[:, tc:]).astype(o_ref.dtype)


# --------------------------------------------------------------------------- #
# VMEM accounting / tile selection.
# --------------------------------------------------------------------------- #
def _vmem_limits():
    """(vmem_limit_bytes, tile_budget_bytes) derived from the chip's VMEM capacity."""
    cap = 0
    try:
        cap = int(getattr(pltpu.get_tpu_info(), "vmem_capacity_bytes", 0) or 0)
    except Exception:
        cap = 0
    if cap <= 0:
        cap = 64 * 1024 * 1024           # conservative default (v7x per-TensorCore VMEM)
    limit = max(32 * 1024 * 1024, min(cap - 16 * 1024 * 1024, 96 * 1024 * 1024))
    budget = (limit * 3) // 4            # headroom for compiler scratch / semaphores
    return limit, budget


def _fused_vmem_bytes(n_rows, tile_c, c_tab, n_cond, x_item, o_item):
    blk = n_rows * tile_c
    b = 2 * blk * (x_item + o_item)              # double-buffered x / out blocks
    b += 5 * blk * 4                             # live f32 temporaries (x, centered, AB, out)
    b += 2 * 2 * n_cond * c_tab * 4              # resident gamma/beta tables (2 buffers each)
    b += 2 * n_rows * max(n_cond, LANE) * 4      # one-hot block (lane padded)
    return b


def _choose_fused_tile_c(n_rows, c, n_cond, x_item, o_item, budget):
    """Largest feature tile (multiple of 128, or C when C <= 128) fitting `budget`,
    capped so the feature grid has >= 2 tiles whenever C >= 256 (v7x dual core).
    Returns None if even the minimum tile does not fit (-> two-pass fallback)."""
    if c <= LANE:
        cands = [c]
    else:
        c_pad = _round_up(c, LANE)
        cap = _round_up(c_pad // 2, LANE) if c_pad >= 2 * LANE else c_pad
        cap = min(cap, 4096)
        cands = list(range(cap, 0, -LANE))
    for tile in cands:
        c_tab = _round_up(c, tile)
        if _fused_vmem_bytes(n_rows, tile, c_tab, n_cond, x_item, o_item) <= budget:
            return tile
    return None


# --------------------------------------------------------------------------- #
# Wrapper.
# --------------------------------------------------------------------------- #
def conditioned_batch_norm(x, y, embed_weight, *, force_two_pass=False):
    """x: (N, C) float, y: (N,) int, embed_weight: (num_conditions, 2*C)."""
    N, C = x.shape
    K = embed_weight.shape[0]
    assert embed_weight.shape[1] == 2 * C

    gamma_tab = embed_weight[:, :C].astype(jnp.float32)     # chunk(2, dim=1)
    beta_tab = embed_weight[:, C:].astype(jnp.float32)
    onehot = jax.nn.one_hot(y.astype(jnp.int32), K, dtype=jnp.float32)   # (N, K), tiny

    vmem_limit, budget = _vmem_limits()
    x_item = jnp.dtype(x.dtype).itemsize
    o_item = x_item

    tile_c = None if force_two_pass else _choose_fused_tile_c(
        N, C, K, x_item, o_item, budget)

    if tile_c is not None:
        # -------------------- single-pass fused path --------------------
        n_tiles = pl.cdiv(C, tile_c)
        c_tab = n_tiles * tile_c
        if c_tab != C:   # pad only the tiny tables (never the (N, C) activations)
            gamma_tab = jnp.pad(gamma_tab, ((0, 0), (0, c_tab - C)))
            beta_tab = jnp.pad(beta_tab, ((0, 0), (0, c_tab - C)))

        kernel = functools.partial(_cbn_fused_kernel, c_total=C, tile_c=tile_c,
                                   n_tiles=n_tiles)
        cost = pl.CostEstimate(
            flops=4 * N * K * c_tab + 8 * N * C,
            transcendentals=c_tab,
            bytes_accessed=N * C * (x_item + o_item) + 2 * K * c_tab * 4 + N * K * 4)

        return pl.pallas_call(
            kernel,
            out_shape=jax.ShapeDtypeStruct((N, C), x.dtype),
            grid_spec=pltpu.PrefetchScalarGridSpec(
                num_scalar_prefetch=0,
                grid=(n_tiles,),
                in_specs=[
                    pl.BlockSpec((N, tile_c), lambda j: (0, j)),     # x tile
                    pl.BlockSpec((N, K), lambda j: (0, 0)),          # one-hot (resident)
                    pl.BlockSpec((K, c_tab), lambda j: (0, 0)),      # gamma table (resident)
                    pl.BlockSpec((K, c_tab), lambda j: (0, 0)),      # beta table (resident)
                ],
                out_specs=pl.BlockSpec((N, tile_c), lambda j: (0, j)),
            ),
            compiler_params=pltpu.CompilerParams(
                dimension_semantics=("parallel",),
                vmem_limit_bytes=vmem_limit,
            ),
            cost_estimate=cost,
        )(x, onehot, gamma_tab, beta_tab)

    # ---------------- two-pass fallback (batch does not fit in VMEM) ----------------
    c_pad = _round_up(C, LANE) if C >= LANE else C
    tile_c_fb = min(c_pad, 512)
    per_row = tile_c_fb * (2 * (x_item + o_item) + 6 * 4)
    tile_n = max(SUBLANE,
                 min(_round_up(N, SUBLANE),
                     max(SUBLANE, (budget // per_row) // SUBLANE * SUBLANE),
                     8192))
    n_c = pl.cdiv(C, tile_c_fb)
    n_n = pl.cdiv(N, tile_n)
    c_tab = n_c * tile_c_fb

    # Pass 1: per-feature sum / sum-of-squares, batch axis tiled + accumulated.
    s1, s2 = pl.pallas_call(
        functools.partial(_stats_kernel, n_total=N, c_total=C),
        out_shape=(jax.ShapeDtypeStruct((1, C), jnp.float32),
                   jax.ShapeDtypeStruct((1, C), jnp.float32)),
        grid_spec=pltpu.PrefetchScalarGridSpec(
            num_scalar_prefetch=0,
            grid=(n_c, n_n),
            in_specs=[pl.BlockSpec((tile_n, tile_c_fb), lambda ci, ni: (ni, ci))],
            out_specs=(pl.BlockSpec((1, tile_c_fb), lambda ci, ni: (0, ci)),
                       pl.BlockSpec((1, tile_c_fb), lambda ci, ni: (0, ci))),
        ),
        compiler_params=pltpu.CompilerParams(
            dimension_semantics=("parallel", "arbitrary"),
            vmem_limit_bytes=vmem_limit,
        ),
    )(x)

    # Tiny (1,C)/(K,C) math on the host graph: fold stats into per-condition affine.
    mean = s1 / N
    var = jnp.maximum(s2 / N - mean * mean, 0.0)
    inv_std = jax.lax.rsqrt(var + EPS)
    a_tab = gamma_tab * inv_std
    b_tab = beta_tab - gamma_tab * mean * inv_std
    if c_tab != C:
        a_tab = jnp.pad(a_tab, ((0, 0), (0, c_tab - C)))
        b_tab = jnp.pad(b_tab, ((0, 0), (0, c_tab - C)))

    # Pass 2: out = x * a[y] + b[y], fully tiled over (features, batch).
    return pl.pallas_call(
        _apply_kernel,
        out_shape=jax.ShapeDtypeStruct((N, C), x.dtype),
        grid_spec=pltpu.PrefetchScalarGridSpec(
            num_scalar_prefetch=0,
            grid=(n_c, n_n),
            in_specs=[
                pl.BlockSpec((tile_n, tile_c_fb), lambda ci, ni: (ni, ci)),   # x
                pl.BlockSpec((tile_n, K), lambda ci, ni: (ni, 0)),            # one-hot
                pl.BlockSpec((K, tile_c_fb), lambda ci, ni: (0, ci)),         # a table
                pl.BlockSpec((K, tile_c_fb), lambda ci, ni: (0, ci)),         # b table
            ],
            out_specs=pl.BlockSpec((tile_n, tile_c_fb), lambda ci, ni: (ni, ci)),
        ),
        compiler_params=pltpu.CompilerParams(
            dimension_semantics=("parallel", "parallel"),
            vmem_limit_bytes=vmem_limit,
        ),
    )(x, onehot, a_tab, b_tab)


def _reference(x, y, embed_weight):
    # Pure-JAX reference mirroring the PyTorch forward (training-mode BN).
    xf = x.astype(jnp.float32)
    mean = jnp.mean(xf, axis=0, keepdims=True)
    var = jnp.mean((xf - mean) ** 2, axis=0, keepdims=True)
    normed = (xf - mean) / jnp.sqrt(var + EPS)
    gb = jnp.take(embed_weight, y, axis=0)
    C = x.shape[1]
    return gb[:, :C] * normed + gb[:, C:]


if __name__ == "__main__":
    num_features = 32       # C
    num_conditions = 4
    batch = 8               # N

    key = jax.random.PRNGKey(0)
    kx, ky, kw = jax.random.split(key, 3)

    # Parameter init matching the module's __init__:
    #   embed.weight[:, :C] ~ Normal(mean=1, std=0.02); embed.weight[:, C:] = 0
    gamma_init = 1.0 + 0.02 * jax.random.normal(
        kw, (num_conditions, num_features), dtype=jnp.float32)
    beta_init = jnp.zeros((num_conditions, num_features), dtype=jnp.float32)
    embed_weight = jnp.concatenate([gamma_init, beta_init], axis=1)

    x = jax.random.normal(kx, (batch, num_features), dtype=jnp.float32)
    y = jax.random.randint(ky, (batch,), 0, num_conditions, dtype=jnp.int32)

    ref = _reference(x, y, embed_weight)

    out = jax.block_until_ready(conditioned_batch_norm(x, y, embed_weight))
    assert out.shape == (batch, num_features)
    assert jnp.allclose(out, ref, atol=1e-4, rtol=1e-4), "fused path mismatch vs reference"

    # Also exercise the large-N two-pass fallback path at small shapes.
    out2 = jax.block_until_ready(
        conditioned_batch_norm(x, y, embed_weight, force_two_pass=True))
    assert jnp.allclose(out2, ref, atol=1e-4, rtol=1e-4), "two-pass path mismatch vs reference"

    print("KERNEL_OK")
</pallas_src>

<mosaic_0001>
module attributes {stable_mosaic.version = 11 : i64} {
  func.func @_cbn_fused_kernel(%arg0: i32, %arg1: memref<8x32xf32, #tpu.memory_space<vmem>>, %arg2: memref<8x4xf32, #tpu.memory_space<vmem>>, %arg3: memref<4x32xf32, #tpu.memory_space<vmem>>, %arg4: memref<4x32xf32, #tpu.memory_space<vmem>>, %arg5: memref<8x32xf32, #tpu.memory_space<vmem>>) attributes {dimension_semantics = [#tpu.dimension_semantics<parallel>], iteration_bounds = array<i64: 1>, scalar_prefetch = 0 : i64, scratch_operands = 0 : i64, tpu.core_type = #tpu.core_type<tc>, window_params = [{transform_indices = @transform_0, window_bounds = array<i64: 8, 32>}, {pipeline_mode = #tpu.pipeline_mode<synchronous>, transform_indices = @transform_1, window_bounds = array<i64: 8, 4>}, {pipeline_mode = #tpu.pipeline_mode<synchronous>, transform_indices = @transform_2, window_bounds = array<i64: 4, 32>}, {pipeline_mode = #tpu.pipeline_mode<synchronous>, transform_indices = @transform_3, window_bounds = array<i64: 4, 32>}, {transform_indices = @transform_4, window_bounds = array<i64: 8, 32>}]} {
    %c0 = arith.constant 0 : index
    %c0_0 = arith.constant 0 : index
    %0 = vector.load %arg1[%c0, %c0_0] : memref<8x32xf32, #tpu.memory_space<vmem>>, vector<8x32xf32>
    %cst = arith.constant dense<0.000000e+00> : vector<32xf32>
    %1 = vector.multi_reduction <add>, %0, %cst [0] : vector<8x32xf32> to vector<32xf32>
    %2 = vector.shape_cast %1 : vector<32xf32> to vector<1x32xf32>
    %cst_1 = arith.constant 1.250000e-01 : f32
    %3 = vector.broadcast %cst_1 : f32 to vector<1x32xf32>
    %4 = arith.mulf %2, %3 : vector<1x32xf32>
    %5 = vector.broadcast %4 : vector<1x32xf32> to vector<8x32xf32>
    %6 = arith.subf %0, %5 : vector<8x32xf32>
    %7 = arith.mulf %6, %6 : vector<8x32xf32>
    %cst_2 = arith.constant dense<0.000000e+00> : vector<32xf32>
    %8 = vector.multi_reduction <add>, %7, %cst_2 [0] : vector<8x32xf32> to vector<32xf32>
    %9 = vector.shape_cast %8 : vector<32xf32> to vector<1x32xf32>
    %cst_3 = arith.constant 1.250000e-01 : f32
    %10 = vector.broadcast %cst_3 : f32 to vector<1x32xf32>
    %11 = arith.mulf %9, %10 : vector<1x32xf32>
    %cst_4 = arith.constant 9.99999974E-6 : f32
    %12 = vector.broadcast %cst_4 : f32 to vector<1x32xf32>
    %13 = arith.addf %11, %12 : vector<1x32xf32>
    %14 = math.rsqrt %13 : vector<1x32xf32>
    %c0_5 = arith.constant 0 : index
    %c0_6 = arith.constant 0 : index
    %15 = vector.load %arg3[%c0_5, %c0_6] : memref<4x32xf32, #tpu.memory_space<vmem>>, vector<4x32xf32>
    %c0_7 = arith.constant 0 : index
    %c0_8 = arith.constant 0 : index
    %16 = vector.load %arg4[%c0_7, %c0_8] : memref<4x32xf32, #tpu.memory_space<vmem>>, vector<4x32xf32>
    %17 = vector.broadcast %14 : vector<1x32xf32> to vector<4x32xf32>
    %18 = arith.mulf %15, %17 : vector<4x32xf32>
    %19 = arith.mulf %4, %14 : vector<1x32xf32>
    %20 = vector.broadcast %19 : vector<1x32xf32> to vector<4x32xf32>
    %21 = arith.mulf %15, %20 : vector<4x32xf32>
    %22 = arith.subf %16, %21 : vector<4x32xf32>
    %23 = tpu.concatenate %18, %22 in 1 : vector<4x32xf32>, vector<4x32xf32> -> vector<4x64xf32>
    %c0_9 = arith.constant 0 : index
    %c0_10 = arith.constant 0 : index
    %24 = vector.load %arg2[%c0_9, %c0_10] : memref<8x4xf32, #tpu.memory_space<vmem>>, vector<8x4xf32>
    %cst_11 = arith.constant dense<0.000000e+00> : vector<8x64xf32>
    %25 = tpu.matmul %24, %23, %cst_11 {dimension_numbers = #tpu.dot_dimension_numbers<[1], [0], [0], [1], [0, 0, 1, 1], [], []>} : vector<8x4xf32>, vector<4x64xf32>, vector<8x64xf32> -> vector<8x64xf32>
    %26 = vector.extract_strided_slice %25 {offsets = [0, 0], sizes = [8, 32], strides = [1, 1]} : vector<8x64xf32> to vector<8x32xf32>
    %27 = arith.mulf %0, %26 : vector<8x32xf32>
    %28 = vector.extract_strided_slice %25 {offsets = [0, 32], sizes = [8, 32], strides = [1, 1]} : vector<8x64xf32> to vector<8x32xf32>
    %29 = arith.addf %27, %28 : vector<8x32xf32>
    %c0_12 = arith.constant 0 : index
    %c0_13 = arith.constant 0 : index
    %30 = vector.load %arg5[%c0_12, %c0_13] : memref<8x32xf32, #tpu.memory_space<vmem>>, vector<8x32xf32>
    tpu.vector_store %arg5[%c0_12, %c0_13], %29 {strides = array<i32>} : memref<8x32xf32, #tpu.memory_space<vmem>>, vector<8x32xf32>,
    return
  }
  func.func @transform_0(%arg0: i32) -> (i32, i32) {
    %c0_i32 = arith.constant 0 : i32
    %c0_i32_0 = arith.constant 0 : i32
    return %c0_i32, %arg0 : i32, i32
  }
  func.func @transform_1(%arg0: i32) -> (i32, i32) {
    %c0_i32 = arith.constant 0 : i32
    %c0_i32_0 = arith.constant 0 : i32
    %c0_i32_1 = arith.constant 0 : i32
    return %c0_i32, %c0_i32_0 : i32, i32
  }
  func.func @transform_2(%arg0: i32) -> (i32, i32) {
    %c0_i32 = arith.constant 0 : i32
    %c0_i32_0 = arith.constant 0 : i32
    %c0_i32_1 = arith.constant 0 : i32
    return %c0_i32, %c0_i32_0 : i32, i32
  }
  func.func @transform_3(%arg0: i32) -> (i32, i32) {
    %c0_i32 = arith.constant 0 : i32
    %c0_i32_0 = arith.constant 0 : i32
    %c0_i32_1 = arith.constant 0 : i32
    return %c0_i32, %c0_i32_0 : i32, i32
  }
  func.func @transform_4(%arg0: i32) -> (i32, i32) {
    %c0_i32 = arith.constant 0 : i32
    %c0_i32_0 = arith.constant 0 : i32
    return %c0_i32, %arg0 : i32, i32
  }
}

</mosaic_0001>

<llo_original>
// kernel: tpu_custom_call.1
$region0: #{tpu_custom_call.1}
  #allocation0 [shape = 'u32[]', space=smem, size = 0x4, offset = 0x4, fixed_abs, tag = 'smem constant byte address 0x4 - core index']
  #allocation1 [shape = 'u32[144,128]{1,0:T(1,128)}', space=vmem, size = 0x12000, scoped, tag = 'internal scratch']
  %s0 = inlined_call_operand.vmem [shape: f32[8,32], index: 0, kind: input, shape index: {}]
  %s1 = inlined_call_operand.vmem [shape: f32[8,4], index: 1, kind: input, shape index: {}]
  %s2 = inlined_call_operand.vmem [shape: f32[4,32], index: 2, kind: input, shape index: {}]
  %s3 = inlined_call_operand.vmem [shape: f32[4,32], index: 3, kind: input, shape index: {}]
  %s4 = inlined_call_operand.hbm [shape: f32[8,32], index: 4, kind: output, shape index: {}]
  %s5 = sld [smem:[#allocation0]]
  $region26: #{tpu_custom_call.1} parent=0
    _
  %s7 = ssub.s32 1, %s5
  %s8 = scalar_select 0, %s7, %s5
  $region1: #{tpu_custom_call.1} parent=0
    #allocation2 [shape = 'u8[4096]{0}', space=vmem, size = 0x1000, scoped, tag = 'output window, operand 0, single buffered']
    #allocation3 [shape = 's32[1]{0}', space=sflag, size = 0x4, scoped, tag = 'scoped memory for tpu_custom_call.1']
    %9 = vsyncpa [#allocation3], 0
    // Predicated region
    $region2: #{tpu_custom_call.1} parent=1 // pred_check
      _
    $region3: #{tpu_custom_call.1} parent=1 // pred_check_branch
      %11 = sbr.rel (0) target = $region5
    $region4: #{tpu_custom_call.1} parent=1 // pred_region
      _
    $region5: #{tpu_custom_call.1} parent=1 // pred_fallthru
      _
    // Predicated region
    $region6: #{tpu_custom_call.1} parent=1 // pred_check
      _
    $region7: #{tpu_custom_call.1} parent=1 // pred_check_branch
      %13 = sbr.rel (0) target = $region9
    $region8: #{tpu_custom_call.1} parent=1 // pred_region
      _
    $region9: #{tpu_custom_call.1} parent=1 // pred_fallthru
      _
    // Predicated region
    $region10: #{tpu_custom_call.1} parent=1 // pred_check
      _
    $region11: #{tpu_custom_call.1} parent=1 // pred_check_branch
      %15 = sbr.rel (0) target = $region13
    $region12: #{tpu_custom_call.1} parent=1 // pred_region
      _
    $region13: #{tpu_custom_call.1} parent=1 // pred_fallthru
      _
    // Predicated region
    $region14: #{tpu_custom_call.1} parent=1 // pred_check
      _
    $region15: #{tpu_custom_call.1} parent=1 // pred_check_branch
      %17 = sbr.rel (0) target = $region17
    $region16: #{tpu_custom_call.1} parent=1 // pred_region
      _
    $region17: #{tpu_custom_call.1} parent=1 // pred_fallthru
      _
    %v18 = vld [vmem:[%s0] sm:$0xff]
    %vm19 = vcmask 261120
    %v20 = vsel %vm19, %v18, 0.0
    %v21 = vrot.slane %v20, 4
    %v22 = vadd.f32 %v20, %v21
    %v23 = vrot.slane %v22, 2
    %v24 = vadd.f32 %v22, %v23
    %v25 = vrot.slane %v24, 1
    %v26 = vadd.f32 %v24, %v25
    %v27 = vmul.f32 %v26, 0.125
    %v28 = vsub.f32 %v18, %v27
    %v29 = vmul.f32 %v28, %v28
    %v30 = vsel %vm19, %v29, 0.0
    %v31 = vrot.slane %v30, 4
    %v32 = vadd.f32 %v30, %v31
    %v33 = vrot.slane %v32, 2
    %v34 = vadd.f32 %v32, %v33
    %v35 = vrot.slane %v34, 1
    %v36 = vadd.f32 %v34, %v35
    %v37 = vmul.f32 %v36, 0.125
    %v38 = vadd.f32 %v37, 1e-05
    %v39 = vrsqrt.pop %v38
    %v40 = vld [vmem:[%s2] sm:$0xf]
    %v41 = vld [vmem:[%s3] sm:$0xf]
    %v42 = vmul.f32 %v40, %v39
    %v43 = vmul.f32 %v27, %v39
    %v44 = vmul.f32 %v40, %v43
    %v45 = vsub.f32 %v41, %v44
    %47 = vrot.lane.b32.xlu0 %v45, 32
    %v48 = vpop.permute.xlu0 %47
    %v50 = vsel %vm19, %v42, %v48
    %v51 = vld [vmem:[%s1] sm:$0xff]
    %vm52 = vcmask 31744
    %v54 = vsel %vm52, %v51, 0
    %vm56 = vcmask 1043456
    %v58 = vsel %vm56, %v50, 0
    %60 = vmatprep.subr.mxu0 0.0
    %61 = vmatpush1.msra.mxu0 %v58
    %62 = vmatprep.subr.mxu0 0.0
    %63 = vmatpush1.msra.mxu0 0.0
    %64 = vmatprep.subr.mxu0 0.0
    %65 = vmatpush1.msra.mxu0 0.0
    %66 = vmatprep.subr.mxu0 0.0
    %67 = vmatpush1.msra.mxu0 0.0
    %68 = vmatprep.subr.mxu0 0.0
    %69 = vmatpush1.msra.mxu0 0.0
    %70 = vmatprep.subr.mxu0 0.0
    %71 = vmatpush1.msra.mxu0 0.0
    %72 = vmatprep.subr.mxu0 0.0
    %73 = vmatpush1.msra.mxu0 0.0
    %74 = vmatprep.subr.mxu0 0.0
    %75 = vmatpush1.msra.mxu0 0.0
    %76 = vmatprep.subr.mxu0 0.0
    %77 = vmatpush1.msra.mxu0 0.0
    %78 = vmatprep.subr.mxu0 0.0
    %79 = vmatpush1.msra.mxu0 0.0
    %80 = vmatprep.subr.mxu0 0.0
    %81 = vmatpush1.msra.mxu0 0.0
    %82 = vmatprep.subr.mxu0 0.0
    %83 = vmatpush1.msra.mxu0 0.0
    %84 = vmatprep.subr.mxu0 0.0
    %85 = vmatpush1.msra.mxu0 0.0
    %86 = vmatprep.subr.mxu0 0.0
    %87 = vmatpush1.msra.mxu0 0.0
    %88 = vmatprep.subr.mxu0 0.0
    %89 = vmatpush1.msra.mxu0 0.0
    %90 = vmatprep.subr.mxu0 0.0
    %91 = vmatpush1.msra.mxu0 0.0
    %92 = vmatprep.subr.mxu0 0.0
    %93 = vmatpush1.msra.mxu0 0.0
    %94 = vmatprep.subr.mxu0 0.0
    %95 = vmatpush1.msra.mxu0 0.0
    %96 = vmatprep.subr.mxu0 0.0
    %97 = vmatpush1.msra.mxu0 0.0
    %98 = vmatprep.subr.mxu0 0.0
    %99 = vmatpush1.msra.mxu0 0.0
    %100 = vmatprep.subr.mxu0 0.0
    %101 = vmatpush1.msra.mxu0 0.0
    %102 = vmatprep.subr.mxu0 0.0
    %103 = vmatpush1.msra.mxu0 0.0
    %104 = vmatprep.subr.mxu0 0.0
    %105 = vmatpush1.msra.mxu0 0.0
    %106 = vmatprep.subr.mxu0 0.0
    %107 = vmatpush1.msra.mxu0 0.0
    %108 = vmatprep.subr.mxu0 0.0
    %109 = vmatpush1.msra.mxu0 0.0
    %110 = vmatprep.subr.mxu0 0.0
    %111 = vmatpush1.msra.mxu0 0.0
    %112 = vmatprep.subr.mxu0 0.0
    %113 = vmatpush1.msra.mxu0 0.0
    %114 = vmatprep.subr.mxu0 0.0
    %115 = vmatpush1.msra.mxu0 0.0
    %116 = vmatprep.subr.mxu0 0.0
    %117 = vmatpush1.msra.mxu0 0.0
    %118 = vmatprep.subr.mxu0 0.0
    %119 = vmatpush1.msra.mxu0 0.0
    %120 = vmatprep.subr.mxu0 0.0
    %121 = vmatpush1.msra.mxu0 0.0
    %122 = vmatprep.subr.mxu0 0.0
    %123 = vmatpush1.msra.mxu0 0.0
    %124 = vmatprep.mubr.f32.mxu0 0.0
    %125 = vmatmul.mubr.f32.gmra.mrb[0].mxu0 %v54
    %v126 = vpop.f32.mrb[0].mxu0
    %v127 = vadd.f32 0.0, %v126
    %v128 = vpop.f32.mrb[0].mxu0
    %129 = vdwg.mxu0
    %v130 = vmul.f32 %v18, %v127
    %132 = vrot.lane.b32.xlu0 %v127, 96
    %v133 = vpop.permute.xlu0 %132
    %v135 = vadd.f32 %v130, %v133
    %136 = vst.msk [vmem:[#allocation2] sm:$0xff] %vm19, %v135
    // Predicated region
    $region18: #{tpu_custom_call.1} parent=1 // pred_check
      _
    $region19: #{tpu_custom_call.1} parent=1 // pred_check_branch
      %138 = sbr.rel (0) target = $region21
    $region20: #{tpu_custom_call.1} parent=1 // pred_region
      %s140 = ssub.s32 128, 128
      %141 = vsyncadd [#allocation3], %s140
      %s143 = sshll.u32 [#allocation2], 4
      %s144 = int_to_ptr.vmem [resolvable:$true] %s143
      %146 = dma.vmem_to_hbm [thread:$0]  %s144, 128, %s4, [#allocation3]
    $region21: #{tpu_custom_call.1} parent=1 // pred_fallthru
      _
    // Predicated region
    $region22: #{tpu_custom_call.1} parent=1 // pred_check
      _
    $region23: #{tpu_custom_call.1} parent=1 // pred_check_branch
      %148 = sbr.rel (0) target = $region25
    $region24: #{tpu_custom_call.1} parent=1 // pred_region
      %149 = dma.done [#allocation3], 128
    $region25: #{tpu_custom_call.1} parent=1 // pred_fallthru
      _
    %150 = vsyncpa [#allocation3], 1

</llo_original>
